<compile_context>
chip_gen: v7x
topology: tpu7x:2x2x1
jax: 0.10.0
libtpu: 0.0.40
codegen_flags: <defaults>
</compile_context>

<pallas_src>
import functools

import jax
import jax.numpy as jnp
import numpy as np
from jax.experimental import pallas as pl
from jax.experimental.pallas import tpu as pltpu


def _round_up(x, m):
    return (x + m - 1) // m * m


def fsmn_dual_kernel(x_ref, w1_ref, b1_ref, w2_ref, c1w_ref, c2w_ref, o_ref,
                     pbuf, *, K, pad):
    bb, T, Dp = x_ref.shape

    x = x_ref[...].astype(jnp.float32)                      # (bb, T, Dp)
    x2 = x.reshape(bb * T, Dp)

    # f1 = relu(linear(input)); p1 = project(f1)   (MXU in bf16, f32 accumulate)
    h = jnp.dot(x2.astype(jnp.bfloat16), w1_ref[...],
                preferred_element_type=jnp.float32) + b1_ref[...]
    h = jnp.maximum(h, 0.0)                                 # (bb*T, Hp)
    p = jnp.dot(h.astype(jnp.bfloat16), w2_ref[...],
                preferred_element_type=jnp.float32)         # (bb*T, Dp)
    p = p.reshape(bb, T, Dp)

    # Zero-padded time scratch: halos are zero, taps are static slices
    # (replaces the old shift-matrix matmuls).  Halos are re-zeroed every step
    # so correctness does not depend on which core ran grid step 0.
    halo = jnp.zeros((bb, pad, Dp), jnp.float32)
    pbuf[:, :pad, :] = halo
    pbuf[:, pad + T:, :] = halo
    pbuf[:, pad:pad + T, :] = p

    # conv1: depthwise FIR along time (groups = D), per-channel scale + residual.
    c1 = p
    for k in range(K):
        c1 = c1 + pbuf[:, k:k + T, :] * c1w_ref[k]          # (1, Dp) broadcast

    # conv2: grouped FIR (dense block-diagonal expansion), all K taps fused into
    # a single deep contraction + residual.  Reuse the padded scratch for c1.
    pbuf[:, pad:pad + T, :] = c1
    taps = jnp.concatenate([pbuf[:, k:k + T, :] for k in range(K)], axis=-1)
    conv2 = jnp.dot(taps.reshape(bb * T, K * Dp).astype(jnp.bfloat16),
                    c2w_ref[...],
                    preferred_element_type=jnp.float32).reshape(bb, T, Dp)

    # out = input + (c1 + conv2)   (both residuals in f32)
    o_ref[...] = (x + c1 + conv2).astype(o_ref.dtype)


@functools.partial(jax.jit, static_argnums=(2,))
def uni_deep_fsmn_dual(x, params, lorder):
    B, T, D = x.shape
    K = 2 * lorder - 1
    pad = lorder - 1
    Dp, Hp = params["w1"].shape

    # Block several batch elements per grid step so the matmul M dim is large.
    bb = max(1, min(B, 256 // max(T, 1)))
    nblk = (B + bb - 1) // bb
    Bp = nblk * bb

    # Lane-dense padding of the feature dim (and batch to a multiple of bb).
    xp = jnp.pad(x, ((0, Bp - B), (0, 0), (0, Dp - D)))

    flops = 2 * Bp * T * (Dp * Hp + Hp * Dp + K * Dp * Dp) + Bp * T * K * Dp
    bytes_accessed = (2 * Bp * T * Dp * 4
                      + (Dp * Hp + Hp * Dp + K * Dp * Dp) * 2
                      + Hp * 4 + K * Dp * 4)

    grid_spec = pltpu.PrefetchScalarGridSpec(
        num_scalar_prefetch=0,
        grid=(nblk,),
        in_specs=[
            pl.BlockSpec((bb, T, Dp), lambda i: (i, 0, 0)),   # x (batch block)
            pl.BlockSpec((Dp, Hp), lambda i: (0, 0)),         # linear W^T (bf16)
            pl.BlockSpec((1, Hp), lambda i: (0, 0)),          # linear bias (f32)
            pl.BlockSpec((Hp, Dp), lambda i: (0, 0)),         # project W^T (bf16)
            pl.BlockSpec((K, 1, Dp), lambda i: (0, 0, 0)),    # conv1 taps (f32)
            pl.BlockSpec((K * Dp, Dp), lambda i: (0, 0)),     # conv2 stacked (bf16)
        ],
        out_specs=pl.BlockSpec((bb, T, Dp), lambda i: (i, 0, 0)),
        scratch_shapes=[pltpu.VMEM((bb, T + 2 * pad, Dp), jnp.float32)],
    )

    out = pl.pallas_call(
        functools.partial(fsmn_dual_kernel, K=K, pad=pad),
        out_shape=jax.ShapeDtypeStruct((Bp, T, Dp), x.dtype),
        grid_spec=grid_spec,
        compiler_params=pltpu.CompilerParams(
            dimension_semantics=("parallel",),
            vmem_limit_bytes=32 * 1024 * 1024),
        cost_estimate=pl.CostEstimate(flops=flops, transcendentals=0,
                                      bytes_accessed=bytes_accessed),
    )(xp, params["w1"], params["b1"], params["w2"],
      params["c1w"], params["c2w_stack"])

    return out[:B, :, :D]


def init_params(key, input_dim, output_dim, hidden_size, lorder):
    """Synthetic parameters: torch-layout for the reference, padded lane-dense
    kernel-layout (bf16 MXU operands, pre-stacked conv2 weight) for Pallas."""
    K = 2 * lorder - 1
    D = output_dim
    H = hidden_size
    Dp = _round_up(D, 128)
    Hp = _round_up(H, 128)

    k1, k2, k3, k4, k5 = jax.random.split(key, 5)
    lin_w = jax.random.normal(k1, (H, input_dim), jnp.float32) * 0.1    # (out, in)
    lin_b = jax.random.normal(k2, (H,), jnp.float32) * 0.1
    proj_w = jax.random.normal(k3, (D, H), jnp.float32) * 0.1           # (out, in)
    conv1_w = jax.random.normal(k4, (D, 1, K, 1), jnp.float32) * 0.1    # groups=D
    conv2_w = jax.random.normal(k5, (D, 4, K, 1), jnp.float32) * 0.1    # groups=D//4

    # ---- kernel-layout (zero-padded, lane-dense) ----
    w1 = np.zeros((Dp, Hp), np.float32)
    w1[:input_dim, :H] = np.asarray(lin_w).T
    b1 = np.zeros((1, Hp), np.float32)
    b1[0, :H] = np.asarray(lin_b)
    w2 = np.zeros((Hp, Dp), np.float32)
    w2[:H, :D] = np.asarray(proj_w).T
    c1w = np.zeros((K, 1, Dp), np.float32)
    c1w[:, 0, :D] = np.asarray(conv1_w)[:, 0, :, 0].T                   # (K, D)

    # Dense block-diagonal expansion of the grouped conv2 weight, stacked over
    # taps into one (K*Dp, Dp) matrix for a single fused deep contraction.
    # Fine while D <= 128 (one MXU tile wide); for much larger D keep the
    # block-diagonal structure instead of dense-expanding.
    G = D // 4
    c2 = np.asarray(conv2_w)[:, :, :, 0].reshape(G, 4, 4, K)            # (g, co, ci, k)
    c2w_stack = np.zeros((K, Dp, Dp), np.float32)
    for g in range(G):
        c2w_stack[:, 4 * g:4 * g + 4, 4 * g:4 * g + 4] = np.transpose(
            c2[g], (2, 1, 0))                                           # (k, ci, co)
    c2w_stack = c2w_stack.reshape(K * Dp, Dp)

    kernel_params = {
        "w1": jnp.asarray(w1, jnp.bfloat16),
        "b1": jnp.asarray(b1, jnp.float32),
        "w2": jnp.asarray(w2, jnp.bfloat16),
        "c1w": jnp.asarray(c1w, jnp.float32),
        "c2w_stack": jnp.asarray(c2w_stack, jnp.bfloat16),
    }
    torch_params = {"lin_w": lin_w, "lin_b": lin_b, "proj_w": proj_w,
                    "conv1_w": conv1_w, "conv2_w": conv2_w}
    return kernel_params, torch_params


def reference_forward(x, tp, lorder):
    """Pure-JAX (f32) mirror of the PyTorch forward, for correctness check."""
    B, T, D = x.shape
    K = 2 * lorder - 1
    pad = lorder - 1
    f1 = jax.nn.relu(x @ tp["lin_w"].T + tp["lin_b"])
    p1 = f1 @ tp["proj_w"].T                                            # (B, T, D)

    p_pad = jnp.pad(p1, ((0, 0), (pad, pad), (0, 0)))
    conv1 = sum(p_pad[:, k:k + T, :] * tp["conv1_w"][:, 0, k, 0][None, None, :]
                for k in range(K))
    c1 = p1 + conv1

    c1_pad = jnp.pad(c1, ((0, 0), (pad, pad), (0, 0)))
    G = D // 4
    w2r = tp["conv2_w"][:, :, :, 0].reshape(G, 4, 4, K)                 # (g, co, ci, k)
    conv2 = jnp.zeros((B, T, G, 4), x.dtype)
    for k in range(K):
        sl = c1_pad[:, k:k + T, :].reshape(B, T, G, 4)
        conv2 = conv2 + jnp.einsum('btgi,goi->btgo', sl, w2r[:, :, :, k])
    out = c1 + conv2.reshape(B, T, D)
    return x + out


if __name__ == "__main__":
    B, T = 2, 16
    input_dim = output_dim = 32     # residual requires output_dim == input_dim
    hidden_size = 32
    lorder = 3                      # conv kernel length K = 2*lorder - 1 = 5

    key = jax.random.PRNGKey(0)
    kx, kp = jax.random.split(key)
    x = jax.random.normal(kx, (B, T, input_dim), jnp.float32)
    kparams, tparams = init_params(kp, input_dim, output_dim, hidden_size, lorder)

    out = uni_deep_fsmn_dual(x, kparams, lorder)
    out = jax.block_until_ready(out)

    ref = reference_forward(x, tparams, lorder)
    np.testing.assert_allclose(np.asarray(out), np.asarray(ref),
                               rtol=2e-2, atol=2e-2)
    print("KERNEL_OK")
</pallas_src>

<mosaic_0001>
module attributes {stable_mosaic.version = 11 : i64} {
  func.func @fsmn_dual_kernel(%arg0: i32, %arg1: memref<2x16x128xf32, #tpu.memory_space<vmem>>, %arg2: memref<128x128xbf16, #tpu.memory_space<vmem>>, %arg3: memref<1x128xf32, #tpu.memory_space<vmem>>, %arg4: memref<128x128xbf16, #tpu.memory_space<vmem>>, %arg5: memref<5x1x128xf32, #tpu.memory_space<vmem>>, %arg6: memref<640x128xbf16, #tpu.memory_space<vmem>>, %arg7: memref<2x16x128xf32, #tpu.memory_space<vmem>>, %arg8: memref<2x20x128xf32, #tpu.memory_space<vmem>>) attributes {dimension_semantics = [#tpu.dimension_semantics<parallel>], iteration_bounds = array<i64: 1>, scalar_prefetch = 0 : i64, scratch_operands = 1 : i64, tpu.core_type = #tpu.core_type<tc>, window_params = [{transform_indices = @transform_0, window_bounds = array<i64: 2, 16, 128>}, {pipeline_mode = #tpu.pipeline_mode<synchronous>, transform_indices = @transform_1, window_bounds = array<i64: 128, 128>}, {pipeline_mode = #tpu.pipeline_mode<synchronous>, transform_indices = @transform_2, window_bounds = array<i64: 1, 128>}, {pipeline_mode = #tpu.pipeline_mode<synchronous>, transform_indices = @transform_3, window_bounds = array<i64: 128, 128>}, {pipeline_mode = #tpu.pipeline_mode<synchronous>, transform_indices = @transform_4, window_bounds = array<i64: 5, 1, 128>}, {pipeline_mode = #tpu.pipeline_mode<synchronous>, transform_indices = @transform_5, window_bounds = array<i64: 640, 128>}, {transform_indices = @transform_6, window_bounds = array<i64: 2, 16, 128>}]} {
    %c0 = arith.constant 0 : index
    %c0_0 = arith.constant 0 : index
    %c0_1 = arith.constant 0 : index
    %0 = vector.load %arg1[%c0, %c0_0, %c0_1] : memref<2x16x128xf32, #tpu.memory_space<vmem>>, vector<2x16x128xf32>
    %1 = vector.shape_cast %0 : vector<2x16x128xf32> to vector<32x128xf32>
    %2 = arith.truncf %1 : vector<32x128xf32> to vector<32x128xbf16>
    %c0_2 = arith.constant 0 : index
    %c0_3 = arith.constant 0 : index
    %3 = vector.load %arg2[%c0_2, %c0_3] : memref<128x128xbf16, #tpu.memory_space<vmem>>, vector<128x128xbf16>
    %cst = arith.constant dense<0.000000e+00> : vector<32x128xf32>
    %4 = tpu.matmul %2, %3, %cst {dimension_numbers = #tpu.dot_dimension_numbers<[1], [0], [0], [1], [0, 0, 1, 1], [], []>} : vector<32x128xbf16>, vector<128x128xbf16>, vector<32x128xf32> -> vector<32x128xf32>
    %c0_4 = arith.constant 0 : index
    %c0_5 = arith.constant 0 : index
    %5 = vector.load %arg3[%c0_4, %c0_5] : memref<1x128xf32, #tpu.memory_space<vmem>>, vector<1x128xf32>
    %6 = vector.broadcast %5 : vector<1x128xf32> to vector<32x128xf32>
    %7 = arith.addf %4, %6 : vector<32x128xf32>
    %cst_6 = arith.constant 0.000000e+00 : f32
    %8 = vector.broadcast %cst_6 : f32 to vector<32x128xf32>
    %9 = arith.maximumf %7, %8 : vector<32x128xf32>
    %10 = arith.truncf %9 : vector<32x128xf32> to vector<32x128xbf16>
    %c0_7 = arith.constant 0 : index
    %c0_8 = arith.constant 0 : index
    %11 = vector.load %arg4[%c0_7, %c0_8] : memref<128x128xbf16, #tpu.memory_space<vmem>>, vector<128x128xbf16>
    %cst_9 = arith.constant dense<0.000000e+00> : vector<32x128xf32>
    %12 = tpu.matmul %10, %11, %cst_9 {dimension_numbers = #tpu.dot_dimension_numbers<[1], [0], [0], [1], [0, 0, 1, 1], [], []>} : vector<32x128xbf16>, vector<128x128xbf16>, vector<32x128xf32> -> vector<32x128xf32>
    %13 = vector.shape_cast %12 : vector<32x128xf32> to vector<2x16x128xf32>
    %cst_10 = arith.constant 0.000000e+00 : f32
    %14 = vector.broadcast %cst_10 : f32 to vector<2x2x128xf32>
    %c0_11 = arith.constant 0 : index
    %c0_12 = arith.constant 0 : index
    %c0_13 = arith.constant 0 : index
    %15 = vector.load %arg8[%c0_11, %c0_12, %c0_13] : memref<2x20x128xf32, #tpu.memory_space<vmem>>, vector<2x2x128xf32>
    tpu.vector_store %arg8[%c0_11, %c0_12, %c0_13], %14 {strides = array<i32>} : memref<2x20x128xf32, #tpu.memory_space<vmem>>, vector<2x2x128xf32>,
    %c0_14 = arith.constant 0 : index
    %c18 = arith.constant 18 : index
    %c0_15 = arith.constant 0 : index
    %16 = vector.load %arg8[%c0_14, %c18, %c0_15] : memref<2x20x128xf32, #tpu.memory_space<vmem>>, vector<2x2x128xf32>
    tpu.vector_store %arg8[%c0_14, %c18, %c0_15], %14 {strides = array<i32>} : memref<2x20x128xf32, #tpu.memory_space<vmem>>, vector<2x2x128xf32>,
    %c0_16 = arith.constant 0 : index
    %c2 = arith.constant 2 : index
    %c0_17 = arith.constant 0 : index
    %17 = vector.load %arg8[%c0_16, %c2, %c0_17] : memref<2x20x128xf32, #tpu.memory_space<vmem>>, vector<2x16x128xf32>
    tpu.vector_store %arg8[%c0_16, %c2, %c0_17], %13 {strides = array<i32>} : memref<2x20x128xf32, #tpu.memory_space<vmem>>, vector<2x16x128xf32>,
    %c0_18 = arith.constant 0 : index
    %c0_19 = arith.constant 0 : index
    %c0_20 = arith.constant 0 : index
    %18 = vector.load %arg8[%c0_18, %c0_19, %c0_20] : memref<2x20x128xf32, #tpu.memory_space<vmem>>, vector<2x16x128xf32>
    %c0_21 = arith.constant 0 : index
    %c0_22 = arith.constant 0 : index
    %c0_23 = arith.constant 0 : index
    %19 = vector.load %arg5[%c0_21, %c0_22, %c0_23] : memref<5x1x128xf32, #tpu.memory_space<vmem>>, vector<1x1x128xf32>
    %20 = vector.shape_cast %19 : vector<1x1x128xf32> to vector<1x128xf32>
    %21 = vector.shape_cast %20 : vector<1x128xf32> to vector<1x1x128xf32>
    %22 = vector.broadcast %21 : vector<1x1x128xf32> to vector<2x16x128xf32>
    %23 = arith.mulf %18, %22 : vector<2x16x128xf32>
    %24 = arith.addf %13, %23 : vector<2x16x128xf32>
    %c0_24 = arith.constant 0 : index
    %c1 = arith.constant 1 : index
    %c0_25 = arith.constant 0 : index
    %25 = vector.load %arg8[%c0_24, %c1, %c0_25] : memref<2x20x128xf32, #tpu.memory_space<vmem>>, vector<2x16x128xf32>
    %c1_26 = arith.constant 1 : index
    %c0_27 = arith.constant 0 : index
    %c0_28 = arith.constant 0 : index
    %26 = vector.load %arg5[%c1_26, %c0_27, %c0_28] : memref<5x1x128xf32, #tpu.memory_space<vmem>>, vector<1x1x128xf32>
    %27 = vector.shape_cast %26 : vector<1x1x128xf32> to vector<1x128xf32>
    %28 = vector.shape_cast %27 : vector<1x128xf32> to vector<1x1x128xf32>
    %29 = vector.broadcast %28 : vector<1x1x128xf32> to vector<2x16x128xf32>
    %30 = arith.mulf %25, %29 : vector<2x16x128xf32>
    %31 = arith.addf %24, %30 : vector<2x16x128xf32>
    %c0_29 = arith.constant 0 : index
    %c2_30 = arith.constant 2 : index
    %c0_31 = arith.constant 0 : index
    %32 = vector.load %arg8[%c0_29, %c2_30, %c0_31] : memref<2x20x128xf32, #tpu.memory_space<vmem>>, vector<2x16x128xf32>
    %c2_32 = arith.constant 2 : index
    %c0_33 = arith.constant 0 : index
    %c0_34 = arith.constant 0 : index
    %33 = vector.load %arg5[%c2_32, %c0_33, %c0_34] : memref<5x1x128xf32, #tpu.memory_space<vmem>>, vector<1x1x128xf32>
    %34 = vector.shape_cast %33 : vector<1x1x128xf32> to vector<1x128xf32>
    %35 = vector.shape_cast %34 : vector<1x128xf32> to vector<1x1x128xf32>
    %36 = vector.broadcast %35 : vector<1x1x128xf32> to vector<2x16x128xf32>
    %37 = arith.mulf %32, %36 : vector<2x16x128xf32>
    %38 = arith.addf %31, %37 : vector<2x16x128xf32>
    %c0_35 = arith.constant 0 : index
    %c3 = arith.constant 3 : index
    %c0_36 = arith.constant 0 : index
    %39 = vector.load %arg8[%c0_35, %c3, %c0_36] : memref<2x20x128xf32, #tpu.memory_space<vmem>>, vector<2x16x128xf32>
    %c3_37 = arith.constant 3 : index
    %c0_38 = arith.constant 0 : index
    %c0_39 = arith.constant 0 : index
    %40 = vector.load %arg5[%c3_37, %c0_38, %c0_39] : memref<5x1x128xf32, #tpu.memory_space<vmem>>, vector<1x1x128xf32>
    %41 = vector.shape_cast %40 : vector<1x1x128xf32> to vector<1x128xf32>
    %42 = vector.shape_cast %41 : vector<1x128xf32> to vector<1x1x128xf32>
    %43 = vector.broadcast %42 : vector<1x1x128xf32> to vector<2x16x128xf32>
    %44 = arith.mulf %39, %43 : vector<2x16x128xf32>
    %45 = arith.addf %38, %44 : vector<2x16x128xf32>
    %c0_40 = arith.constant 0 : index
    %c4 = arith.constant 4 : index
    %c0_41 = arith.constant 0 : index
    %46 = vector.load %arg8[%c0_40, %c4, %c0_41] : memref<2x20x128xf32, #tpu.memory_space<vmem>>, vector<2x16x128xf32>
    %c4_42 = arith.constant 4 : index
    %c0_43 = arith.constant 0 : index
    %c0_44 = arith.constant 0 : index
    %47 = vector.load %arg5[%c4_42, %c0_43, %c0_44] : memref<5x1x128xf32, #tpu.memory_space<vmem>>, vector<1x1x128xf32>
    %48 = vector.shape_cast %47 : vector<1x1x128xf32> to vector<1x128xf32>
    %49 = vector.shape_cast %48 : vector<1x128xf32> to vector<1x1x128xf32>
    %50 = vector.broadcast %49 : vector<1x1x128xf32> to vector<2x16x128xf32>
    %51 = arith.mulf %46, %50 : vector<2x16x128xf32>
    %52 = arith.addf %45, %51 : vector<2x16x128xf32>
    %c0_45 = arith.constant 0 : index
    %c2_46 = arith.constant 2 : index
    %c0_47 = arith.constant 0 : index
    %53 = vector.load %arg8[%c0_45, %c2_46, %c0_47] : memref<2x20x128xf32, #tpu.memory_space<vmem>>, vector<2x16x128xf32>
    tpu.vector_store %arg8[%c0_45, %c2_46, %c0_47], %52 {strides = array<i32>} : memref<2x20x128xf32, #tpu.memory_space<vmem>>, vector<2x16x128xf32>,
    %c0_48 = arith.constant 0 : index
    %c0_49 = arith.constant 0 : index
    %c0_50 = arith.constant 0 : index
    %54 = vector.load %arg8[%c0_48, %c0_49, %c0_50] : memref<2x20x128xf32, #tpu.memory_space<vmem>>, vector<2x16x128xf32>
    %c0_51 = arith.constant 0 : index
    %c1_52 = arith.constant 1 : index
    %c0_53 = arith.constant 0 : index
    %55 = vector.load %arg8[%c0_51, %c1_52, %c0_53] : memref<2x20x128xf32, #tpu.memory_space<vmem>>, vector<2x16x128xf32>
    %c0_54 = arith.constant 0 : index
    %c2_55 = arith.constant 2 : index
    %c0_56 = arith.constant 0 : index
    %56 = vector.load %arg8[%c0_54, %c2_55, %c0_56] : memref<2x20x128xf32, #tpu.memory_space<vmem>>, vector<2x16x128xf32>
    %c0_57 = arith.constant 0 : index
    %c3_58 = arith.constant 3 : index
    %c0_59 = arith.constant 0 : index
    %57 = vector.load %arg8[%c0_57, %c3_58, %c0_59] : memref<2x20x128xf32, #tpu.memory_space<vmem>>, vector<2x16x128xf32>
    %c0_60 = arith.constant 0 : index
    %c4_61 = arith.constant 4 : index
    %c0_62 = arith.constant 0 : index
    %58 = vector.load %arg8[%c0_60, %c4_61, %c0_62] : memref<2x20x128xf32, #tpu.memory_space<vmem>>, vector<2x16x128xf32>
    %59 = tpu.concatenate %54, %55, %56, %57, %58 in 2 : vector<2x16x128xf32>, vector<2x16x128xf32>, vector<2x16x128xf32>, vector<2x16x128xf32>, vector<2x16x128xf32> -> vector<2x16x640xf32>
    %60 = vector.shape_cast %59 : vector<2x16x640xf32> to vector<32x640xf32>
    %61 = arith.truncf %60 : vector<32x640xf32> to vector<32x640xbf16>
    %c0_63 = arith.constant 0 : index
    %c0_64 = arith.constant 0 : index
    %62 = vector.load %arg6[%c0_63, %c0_64] : memref<640x128xbf16, #tpu.memory_space<vmem>>, vector<640x128xbf16>
    %cst_65 = arith.constant dense<0.000000e+00> : vector<32x128xf32>
    %63 = tpu.matmul %61, %62, %cst_65 {dimension_numbers = #tpu.dot_dimension_numbers<[1], [0], [0], [1], [0, 0, 1, 1], [], []>} : vector<32x640xbf16>, vector<640x128xbf16>, vector<32x128xf32> -> vector<32x128xf32>
    %64 = vector.shape_cast %63 : vector<32x128xf32> to vector<2x16x128xf32>
    %65 = arith.addf %0, %52 : vector<2x16x128xf32>
    %66 = arith.addf %65, %64 : vector<2x16x128xf32>
    %c0_66 = arith.constant 0 : index
    %c0_67 = arith.constant 0 : index
    %c0_68 = arith.constant 0 : index
    %67 = vector.load %arg7[%c0_66, %c0_67, %c0_68] : memref<2x16x128xf32, #tpu.memory_space<vmem>>, vector<2x16x128xf32>
    tpu.vector_store %arg7[%c0_66, %c0_67, %c0_68], %66 {strides = array<i32>} : memref<2x16x128xf32, #tpu.memory_space<vmem>>, vector<2x16x128xf32>,
    return
  }
  func.func @transform_0(%arg0: i32) -> (i32, i32, i32) {
    %c0_i32 = arith.constant 0 : i32
    %c0_i32_0 = arith.constant 0 : i32
    %c0_i32_1 = arith.constant 0 : i32
    return %arg0, %c0_i32, %c0_i32_0 : i32, i32, i32
  }
  func.func @transform_1(%arg0: i32) -> (i32, i32) {
    %c0_i32 = arith.constant 0 : i32
    %c0_i32_0 = arith.constant 0 : i32
    %c0_i32_1 = arith.constant 0 : i32
    return %c0_i32, %c0_i32_0 : i32, i32
  }
  func.func @transform_2(%arg0: i32) -> (i32, i32) {
    %c0_i32 = arith.constant 0 : i32
    %c0_i32_0 = arith.constant 0 : i32
    %c0_i32_1 = arith.constant 0 : i32
    return %c0_i32, %c0_i32_0 : i32, i32
  }
  func.func @transform_3(%arg0: i32) -> (i32, i32) {
    %c0_i32 = arith.constant 0 : i32
    %c0_i32_0 = arith.constant 0 : i32
    %c0_i32_1 = arith.constant 0 : i32
    return %c0_i32, %c0_i32_0 : i32, i32
  }
  func.func @transform_4(%arg0: i32) -> (i32, i32, i32) {
    %c0_i32 = arith.constant 0 : i32
    %c0_i32_0 = arith.constant 0 : i32
    %c0_i32_1 = arith.constant 0 : i32
    %c0_i32_2 = arith.constant 0 : i32
    return %c0_i32, %c0_i32_0, %c0_i32_1 : i32, i32, i32
  }
  func.func @transform_5(%arg0: i32) -> (i32, i32) {
    %c0_i32 = arith.constant 0 : i32
    %c0_i32_0 = arith.constant 0 : i32
    %c0_i32_1 = arith.constant 0 : i32
    return %c0_i32, %c0_i32_0 : i32, i32
  }
  func.func @transform_6(%arg0: i32) -> (i32, i32, i32) {
    %c0_i32 = arith.constant 0 : i32
    %c0_i32_0 = arith.constant 0 : i32
    %c0_i32_1 = arith.constant 0 : i32
    return %arg0, %c0_i32, %c0_i32_0 : i32, i32, i32
  }
}

</mosaic_0001>

<llo_original>
// kernel: uni_deep_fsmn_dual.1
$region0: #{uni_deep_fsmn_dual.1}
  #allocation0 [shape = 'u32[]', space=smem, size = 0x4, offset = 0x4, fixed_abs, tag = 'smem constant byte address 0x4 - core index']
  #allocation1 [shape = 'u32[144,128]{1,0:T(1,128)}', space=vmem, size = 0x12000, scoped, tag = 'internal scratch']
  #allocation2 [shape = 'f32[2,20,128]{2,1,0:T(8,128)}', space=vmem, size = 0x6000, scoped, tag = 'scratch operand']
  %s0 = inlined_call_operand.vmem [shape: f32[2,16,128], index: 0, kind: input, shape index: {}]
  %s1 = inlined_call_operand.vmem [shape: bf16[128,128], index: 1, kind: input, shape index: {}]
  %s2 = inlined_call_operand.vmem [shape: f32[1,128], index: 2, kind: input, shape index: {}]
  %s3 = inlined_call_operand.hbm [shape: bf16[128,128], index: 3, kind: input, shape index: {}]
  %s4 = inlined_call_operand.vmem [shape: f32[5,1,128], index: 4, kind: input, shape index: {}]
  %s5 = inlined_call_operand.hbm [shape: bf16[640,128], index: 5, kind: input, shape index: {}]
  %s6 = inlined_call_operand.hbm [shape: f32[2,16,128], index: 6, kind: output, shape index: {}]
  %s7 = sld [smem:[#allocation0]]
  $region42: #{uni_deep_fsmn_dual.1} parent=0
    _
  %s9 = ssub.s32 1, %s7
  %s10 = scalar_select 0, %s9, %s7
  $region1: #{uni_deep_fsmn_dual.1} parent=0
    #allocation3 [shape = 'u8[32768]{0}', space=vmem, size = 0x8000, scoped, tag = 'input window, operand 3, single buffered']
    #allocation4 [shape = 's32[1]{0}', space=sflag, size = 0x4, scoped, tag = 'scoped memory for uni_deep_fsmn_dual.1']
    #allocation5 [shape = 's32[1]{0}', space=sflag, size = 0x4, scoped, tag = 'scoped memory for uni_deep_fsmn_dual.1']
    #allocation6 [shape = 'u8[163840]{0}', space=vmem, size = 0x28000, scoped, tag = 'input window, operand 5, single buffered']
    #allocation7 [shape = 's32[1]{0}', space=sflag, size = 0x4, scoped, tag = 'scoped memory for uni_deep_fsmn_dual.1']
    #allocation8 [shape = 'u8[16384]{0}', space=vmem, size = 0x4000, scoped, tag = 'output window, operand 0, single buffered']
    %11 = vsyncpa [#allocation4], 0
    %12 = vsyncpa [#allocation7], 0
    %13 = vsyncpa [#allocation5], 0
    // Predicated region
    $region2: #{uni_deep_fsmn_dual.1} parent=1 // pred_check
      _
    $region3: #{uni_deep_fsmn_dual.1} parent=1 // pred_check_branch
      %15 = sbr.rel (0) target = $region5
    $region4: #{uni_deep_fsmn_dual.1} parent=1 // pred_region
      _
    $region5: #{uni_deep_fsmn_dual.1} parent=1 // pred_fallthru
      _
    // Predicated region
    $region6: #{uni_deep_fsmn_dual.1} parent=1 // pred_check
      _
    $region7: #{uni_deep_fsmn_dual.1} parent=1 // pred_check_branch
      %17 = sbr.rel (0) target = $region9
    $region8: #{uni_deep_fsmn_dual.1} parent=1 // pred_region
      _
    $region9: #{uni_deep_fsmn_dual.1} parent=1 // pred_fallthru
      _
    // Predicated region
    $region10: #{uni_deep_fsmn_dual.1} parent=1 // pred_check
      _
    $region11: #{uni_deep_fsmn_dual.1} parent=1 // pred_check_branch
      %19 = sbr.rel (0) target = $region13
    $region12: #{uni_deep_fsmn_dual.1} parent=1 // pred_region
      _
    $region13: #{uni_deep_fsmn_dual.1} parent=1 // pred_fallthru
      _
    // Predicated region
    $region14: #{uni_deep_fsmn_dual.1} parent=1 // pred_check
      _
    $region15: #{uni_deep_fsmn_dual.1} parent=1 // pred_check_branch
      %21 = sbr.rel (0) target = $region17
    $region16: #{uni_deep_fsmn_dual.1} parent=1 // pred_region
      %s23 = ssub.s32 1024, 1024
      %24 = vsyncadd [#allocation4], %s23
      %s25 = sshll.u32 [#allocation3], 4
      %s26 = int_to_ptr.vmem [resolvable:$true] %s25
      %31 = dma.hbm_to_vmem [thread:$0]  %s3, 1024, %s26, [#allocation4], 64, 64, 4
    $region17: #{uni_deep_fsmn_dual.1} parent=1 // pred_fallthru
      _
    // Predicated region
    $region18: #{uni_deep_fsmn_dual.1} parent=1 // pred_check
      _
    $region19: #{uni_deep_fsmn_dual.1} parent=1 // pred_check_branch
      %33 = sbr.rel (0) target = $region21
    $region20: #{uni_deep_fsmn_dual.1} parent=1 // pred_region
      _
    $region21: #{uni_deep_fsmn_dual.1} parent=1 // pred_fallthru
      _
    // Predicated region
    $region22: #{uni_deep_fsmn_dual.1} parent=1 // pred_check
      _
    $region23: #{uni_deep_fsmn_dual.1} parent=1 // pred_check_branch
      %35 = sbr.rel (0) target = $region25
    $region24: #{uni_deep_fsmn_dual.1} parent=1 // pred_region
      %s37 = ssub.s32 5120, 5120
      %38 = vsyncadd [#allocation7], %s37
      %s39 = sshll.u32 [#allocation6], 4
      %s40 = int_to_ptr.vmem [resolvable:$true] %s39
      %45 = dma.hbm_to_vmem [thread:$0]  %s5, 5120, %s40, [#allocation7], 64, 64, 4
    $region25: #{uni_deep_fsmn_dual.1} parent=1 // pred_fallthru
      _
    // Predicated region
    $region26: #{uni_deep_fsmn_dual.1} parent=1 // pred_check
      _
    $region27: #{uni_deep_fsmn_dual.1} parent=1 // pred_check_branch
      %47 = sbr.rel (0) target = $region29
    $region28: #{uni_deep_fsmn_dual.1} parent=1 // pred_region
      %48 = dma.done [#allocation4], 1024
    $region29: #{uni_deep_fsmn_dual.1} parent=1 // pred_fallthru
      _
    // Predicated region
    $region30: #{uni_deep_fsmn_dual.1} parent=1 // pred_check
      _
    $region31: #{uni_deep_fsmn_dual.1} parent=1 // pred_check_branch
      %50 = sbr.rel (0) target = $region33
    $region32: #{uni_deep_fsmn_dual.1} parent=1 // pred_region
      %51 = dma.done [#allocation7], 5120
    $region33: #{uni_deep_fsmn_dual.1} parent=1 // pred_fallthru
      _
    %v53 = vld [vmem:[%s0] sm:$0xff]
    %v54 = vld [vmem:[%s0 + $0x8] sm:$0xff]
    %v55 = vld [vmem:[%s0 + $0x10] sm:$0xff]
    %v56 = vld [vmem:[%s0 + $0x18] sm:$0xff]
    %v57 = vpack.c.bf16 %v54, %v53
    %v58 = vpack.c.bf16 %v56, %v55
    %v59 = vld [vmem:[%s1] sm:$0xf]
    %v60 = vld [vmem:[%s1 + $0x4] sm:$0xf]
    %v61 = vld [vmem:[%s1 + $0x8] sm:$0xf]
    %v62 = vld [vmem:[%s1 + $0xc] sm:$0xf]
    %v63 = vld [vmem:[%s1 + $0x10] sm:$0xf]
    %v64 = vld [vmem:[%s1 + $0x14] sm:$0xf]
    %v65 = vld [vmem:[%s1 + $0x18] sm:$0xf]
    %v66 = vld [vmem:[%s1 + $0x1c] sm:$0xf]
    %v67 = vld [vmem:[%s1 + $0x20] sm:$0xf]
    %v68 = vld [vmem:[%s1 + $0x24] sm:$0xf]
    %v69 = vld [vmem:[%s1 + $0x28] sm:$0xf]
    %v70 = vld [vmem:[%s1 + $0x2c] sm:$0xf]
    %v71 = vld [vmem:[%s1 + $0x30] sm:$0xf]
    %v72 = vld [vmem:[%s1 + $0x34] sm:$0xf]
    %v73 = vld [vmem:[%s1 + $0x38] sm:$0xf]
    %v74 = vld [vmem:[%s1 + $0x3c] sm:$0xf]
    %v75 = vld [vmem:[%s2] sm:$0x1]
    %v77 = vlaneseq
    %v78 = vshrl.u32 %v77, 7
    %v79 = vsub.s32 0, %v78
    %v80 = vrot.slane %v75, %v79
    %v98 = vunpack.c.l.b16 %v59
    %v99 = vunpack.c.l.b16 %v60
    %v100 = vunpack.c.l.b16 %v61
    %v101 = vunpack.c.l.b16 %v62
    %v102 = vunpack.c.l.b16 %v63
    %v103 = vunpack.c.l.b16 %v64
    %v104 = vunpack.c.l.b16 %v65
    %v105 = vunpack.c.l.b16 %v66
    %v106 = vunpack.c.l.b16 %v67
    %v107 = vunpack.c.l.b16 %v68
    %v108 = vunpack.c.l.b16 %v69
    %v109 = vunpack.c.l.b16 %v70
    %v110 = vunpack.c.l.b16 %v71
    %v111 = vunpack.c.l.b16 %v72
    %v112 = vunpack.c.l.b16 %v73
    %v113 = vunpack.c.l.b16 %v74
    %v114 = vpack.c.b16 %v99, %v98
    %v115 = vpack.c.b16 %v101, %v100
    %v116 = vpack.c.b16 %v103, %v102
    %v117 = vpack.c.b16 %v105, %v104
    %v118 = vpack.c.b16 %v107, %v106
    %v119 = vpack.c.b16 %v109, %v108
    %v120 = vpack.c.b16 %v111, %v110
    %v121 = vpack.c.b16 %v113, %v112
    %130 = vmatprep.subr.bf16.mxu0 0
    %131 = vmatpush1.bf16.msra.mxu0 %v114
    %132 = vmatprep.subr.bf16.mxu0 0
    %133 = vmatpush1.bf16.msra.mxu0 %v115
    %134 = vmatprep.subr.bf16.mxu0 0
    %135 = vmatpush1.bf16.msra.mxu0 %v116
    %136 = vmatprep.subr.bf16.mxu0 0
    %137 = vmatpush1.bf16.msra.mxu0 %v117
    %138 = vmatprep.subr.bf16.mxu0 0
    %139 = vmatpush1.bf16.msra.mxu0 %v118
    %140 = vmatprep.subr.bf16.mxu0 0
    %141 = vmatpush1.bf16.msra.mxu0 %v119
    %142 = vmatprep.subr.bf16.mxu0 0
    %143 = vmatpush1.bf16.msra.mxu0 %v120
    %144 = vmatprep.subr.bf16.mxu0 0
    %145 = vmatpush1.bf16.msra.mxu0 %v121
    %146 = vmatprep.subr.bf16.mxu0 0
    %147 = vmatpush1.bf16.msra.mxu0 0
    %148 = vmatprep.subr.bf16.mxu0 0
    %149 = vmatpush1.bf16.msra.mxu0 0
    %150 = vmatprep.subr.bf16.mxu0 0
    %151 = vmatpush1.bf16.msra.mxu0 0
    %152 = vmatprep.subr.bf16.mxu0 0
    %153 = vmatpush1.bf16.msra.mxu0 0
    %154 = vmatprep.subr.bf16.mxu0 0
    %155 = vmatpush1.bf16.msra.mxu0 0
    %156 = vmatprep.subr.bf16.mxu0 0
    %157 = vmatpush1.bf16.msra.mxu0 0
    %158 = vmatprep.subr.bf16.mxu0 0
    %159 = vmatpush1.bf16.msra.mxu0 0
    %160 = vmatprep.subr.bf16.mxu0 0
    %161 = vmatpush1.bf16.msra.mxu0 0
    %162 = vmatprep.mubr.bf16.mxu0 0
    %163 = vmatmul.mubr.bf16.gmra.mrb[0].mxu0 %v57
    %v164 = vpop.f32.mrb[0].mxu0
    %v165 = vadd.f32 %v80, %v164
    %v166 = vpop.f32.mrb[0].mxu0
    %v167 = vpop.f32.mrb[0].mxu0
    %v168 = vadd.f32 %v80, %v167
    %v169 = vpop.f32.mrb[0].mxu0
    %170 = vmatprep.mubr.bf16.mxu0 0
    %171 = vmatmul.mubr.bf16.gmra.mrb[0].mxu0 %v58
    %v172 = vpop.f32.mrb[0].mxu0
    %v173 = vadd.f32 %v80, %v172
    %v174 = vpop.f32.mrb[0].mxu0
    %v175 = vpop.f32.mrb[0].mxu0
    %v176 = vadd.f32 %v80, %v175
    %v177 = vpop.f32.mrb[0].mxu0
    %178 = vdwg.mxu0
    %v179 = vmax.f32 %v165, 0.0
    %v180 = vmax.f32 %v168, 0.0
    %v181 = vmax.f32 %v173, 0.0
    %v182 = vmax.f32 %v176, 0.0
    %v183 = vpack.c.bf16 %v180, %v179
    %v184 = vpack.c.bf16 %v182, %v181
    %v185 = vld [vmem:[#allocation3] sm:$0xf]
    %v186 = vld [vmem:[#allocation3 + $0x4] sm:$0xf]
    %v187 = vld [vmem:[#allocation3 + $0x8] sm:$0xf]
    %v188 = vld [vmem:[#allocation3 + $0xc] sm:$0xf]
    %v189 = vld [vmem:[#allocation3 + $0x10] sm:$0xf]
    %v190 = vld [vmem:[#allocation3 + $0x14] sm:$0xf]
    %v191 = vld [vmem:[#allocation3 + $0x18] sm:$0xf]
    %v192 = vld [vmem:[#allocation3 + $0x1c] sm:$0xf]
    %v193 = vld [vmem:[#allocation3 + $0x20] sm:$0xf]
    %v194 = vld [vmem:[#allocation3 + $0x24] sm:$0xf]
    %v195 = vld [vmem:[#allocation3 + $0x28] sm:$0xf]
    %v196 = vld [vmem:[#allocation3 + $0x2c] sm:$0xf]
    %v197 = vld [vmem:[#allocation3 + $0x30] sm:$0xf]
    %v198 = vld [vmem:[#allocation3 + $0x34] sm:$0xf]
    %v199 = vld [vmem:[#allocation3 + $0x38] sm:$0xf]
    %v200 = vld [vmem:[#allocation3 + $0x3c] sm:$0xf]
    %v217 = vunpack.c.l.b16 %v185
    %v218 = vunpack.c.l.b16 %v186
    %v219 = vunpack.c.l.b16 %v187
    %v220 = vunpack.c.l.b16 %v188
    %v221 = vunpack.c.l.b16 %v189
    %v222 = vunpack.c.l.b16 %v190
    %v223 = vunpack.c.l.b16 %v191
    %v224 = vunpack.c.l.b16 %v192
    %v225 = vunpack.c.l.b16 %v193
    %v226 = vunpack.c.l.b16 %v194
    %v227 = vunpack.c.l.b16 %v195
    %v228 = vunpack.c.l.b16 %v196
    %v229 = vunpack.c.l.b16 %v197
    %v230 = vunpack.c.l.b16 %v198
    %v231 = vunpack.c.l.b16 %v199
    %v232 = vunpack.c.l.b16 %v200
    %v233 = vpack.c.b16 %v218, %v217
    %v234 = vpack.c.b16 %v220, %v219
    %v235 = vpack.c.b16 %v222, %v221
    %v236 = vpack.c.b16 %v224, %v223
    %v237 = vpack.c.b16 %v226, %v225
    %v238 = vpack.c.b16 %v228, %v227
    %v239 = vpack.c.b16 %v230, %v229
    %v240 = vpack.c.b16 %v232, %v231
    %249 = vmatprep.subr.bf16.mxu0 0
    %250 = vmatpush1.bf16.msra.mxu0 %v233
    %251 = vmatprep.subr.bf16.mxu0 0
    %252 = vmatpush1.bf16.msra.mxu0 %v234
    %253 = vmatprep.subr.bf16.mxu0 0
    %254 = vmatpush1.bf16.msra.mxu0 %v235
    %255 = vmatprep.subr.bf16.mxu0 0
    %256 = vmatpush1.bf16.msra.mxu0 %v236
    %257 = vmatprep.subr.bf16.mxu0 0
    %258 = vmatpush1.bf16.msra.mxu0 %v237
    %259 = vmatprep.subr.bf16.mxu0 0
    %260 = vmatpush1.bf16.msra.mxu0 %v238
    %261 = vmatprep.subr.bf16.mxu0 0
    %262 = vmatpush1.bf16.msra.mxu0 %v239
    %263 = vmatprep.subr.bf16.mxu0 0
    %264 = vmatpush1.bf16.msra.mxu0 %v240
    %265 = vmatprep.subr.bf16.mxu0 0
    %266 = vmatpush1.bf16.msra.mxu0 0
    %267 = vmatprep.subr.bf16.mxu0 0
    %268 = vmatpush1.bf16.msra.mxu0 0
    %269 = vmatprep.subr.bf16.mxu0 0
    %270 = vmatpush1.bf16.msra.mxu0 0
    %271 = vmatprep.subr.bf16.mxu0 0
    %272 = vmatpush1.bf16.msra.mxu0 0
    %273 = vmatprep.subr.bf16.mxu0 0
    %274 = vmatpush1.bf16.msra.mxu0 0
    %275 = vmatprep.subr.bf16.mxu0 0
    %276 = vmatpush1.bf16.msra.mxu0 0
    %277 = vmatprep.subr.bf16.mxu0 0
    %278 = vmatpush1.bf16.msra.mxu0 0
    %279 = vmatprep.subr.bf16.mxu0 0
    %280 = vmatpush1.bf16.msra.mxu0 0
    %281 = vmatprep.mubr.bf16.mxu0 0
    %282 = vmatmul.mubr.bf16.gmra.mrb[0].mxu0 %v183
    %v283 = vpop.f32.mrb[0].mxu0
    %v284 = vadd.f32 0.0, %v283
    %v285 = vpop.f32.mrb[0].mxu0
    %v286 = vpop.f32.mrb[0].mxu0
    %v287 = vadd.f32 0.0, %v286
    %v288 = vpop.f32.mrb[0].mxu0
    %289 = vmatprep.mubr.bf16.mxu0 0
    %290 = vmatmul.mubr.bf16.gmra.mrb[0].mxu0 %v184
    %v291 = vpop.f32.mrb[0].mxu0
    %v292 = vadd.f32 0.0, %v291
    %v293 = vpop.f32.mrb[0].mxu0
    %v294 = vpop.f32.mrb[0].mxu0
    %v295 = vadd.f32 0.0, %v294
    %v296 = vpop.f32.mrb[0].mxu0
    %297 = vdwg.mxu0
    %298 = vst [vmem:[#allocation2] sm:$0x3] 0.0
    %299 = vst [vmem:[#allocation2 + $0x18] sm:$0x3] 0.0
    %300 = vst [vmem:[#allocation2 + $0x12] sm:$0x3] 0.0
    %301 = vst [vmem:[#allocation2 + $0x2a] sm:$0x3] 0.0
    %302 = vst [vmem:[#allocation2 + $0x2] sm:$0xff] %v284
    %303 = vst [vmem:[#allocation2 + $0xa] sm:$0xff] %v287
    %304 = vst [vmem:[#allocation2 + $0x1a] sm:$0xff] %v292
    %305 = vst [vmem:[#allocation2 + $0x22] sm:$0xff] %v295
    %v306 = vld [vmem:[#allocation2] sm:$0xff]
    %v307 = vld [vmem:[#allocation2 + $0x8] sm:$0xff]
    %v308 = vld [vmem:[#allocation2 + $0x18] sm:$0xff]
    %v309 = vld [vmem:[#allocation2 + $0x20] sm:$0xff]
    %v310 = vld [vmem:[%s4] sm:$0x1]
    %v312 = vlaneseq
    %v313 = vshrl.u32 %v312, 7
    %v314 = vsub.s32 0, %v313
    %v315 = vrot.slane %v310, %v314
    %v317 = vmul.f32 %v306, %v315
    %v318 = vmul.f32 %v307, %v315
    %v319 = vmul.f32 %v308, %v315
    %v320 = vmul.f32 %v309, %v315
    %v321 = vadd.f32 %v284, %v317
    %v322 = vadd.f32 %v287, %v318
    %v323 = vadd.f32 %v292, %v319
    %v324 = vadd.f32 %v295, %v320
    %v325 = vld [vmem:[#allocation2 + $0x1] sm:$0xff]
    %v326 = vld [vmem:[#allocation2 + $0x9] sm:$0xff]
    %v327 = vld [vmem:[#allocation2 + $0x19] sm:$0xff]
    %v328 = vld [vmem:[#allocation2 + $0x21] sm:$0xff]
    %s329 = scalar_lea.vmem %s4, 1
    %v330 = vld [vmem:[%s329] sm:$0x1]
    %v332 = vlaneseq
    %v333 = vshrl.u32 %v332, 7
    %v334 = vsub.s32 0, %v333
    %v335 = vrot.slane %v330, %v334
    %v337 = vmul.f32 %v325, %v335
    %v338 = vmul.f32 %v326, %v335
    %v339 = vmul.f32 %v327, %v335
    %v340 = vmul.f32 %v328, %v335
    %v341 = vadd.f32 %v321, %v337
    %v342 = vadd.f32 %v322, %v338
    %v343 = vadd.f32 %v323, %v339
    %v344 = vadd.f32 %v324, %v340
    %v345 = vld [vmem:[#allocation2 + $0x2] sm:$0xff]
    %v346 = vld [vmem:[#allocation2 + $0xa] sm:$0xff]
    %v347 = vld [vmem:[#allocation2 + $0x1a] sm:$0xff]
    %v348 = vld [vmem:[#allocation2 + $0x22] sm:$0xff]
    %s349 = scalar_lea.vmem %s4, 2
    %v350 = vld [vmem:[%s349] sm:$0x1]
    %v352 = vlaneseq
    %v353 = vshrl.u32 %v352, 7
    %v354 = vsub.s32 0, %v353
    %v355 = vrot.slane %v350, %v354
    %v357 = vmul.f32 %v345, %v355
    %v358 = vmul.f32 %v346, %v355
    %v359 = vmul.f32 %v347, %v355
    %v360 = vmul.f32 %v348, %v355
    %v361 = vadd.f32 %v341, %v357
    %v362 = vadd.f32 %v342, %v358
    %v363 = vadd.f32 %v343, %v359
    %v364 = vadd.f32 %v344, %v360
    %v365 = vld [vmem:[#allocation2 + $0x3] sm:$0xff]
    %v366 = vld [vmem:[#allocation2 + $0xb] sm:$0xff]
    %v367 = vld [vmem:[#allocation2 + $0x1b] sm:$0xff]
    %v368 = vld [vmem:[#allocation2 + $0x23] sm:$0xff]
    %s369 = scalar_lea.vmem %s4, 3
    %v370 = vld [vmem:[%s369] sm:$0x1]
    %v372 = vlaneseq
    %v373 = vshrl.u32 %v372, 7
    %v374 = vsub.s32 0, %v373
    %v375 = vrot.slane %v370, %v374
    %v377 = vmul.f32 %v365, %v375
    %v378 = vmul.f32 %v366, %v375
    %v379 = vmul.f32 %v367, %v375
    %v380 = vmul.f32 %v368, %v375
    %v381 = vadd.f32 %v361, %v377
    %v382 = vadd.f32 %v362, %v378
    %v383 = vadd.f32 %v363, %v379
    %v384 = vadd.f32 %v364, %v380
    %v385 = vld [vmem:[#allocation2 + $0x4] sm:$0xff]
    %v386 = vld [vmem:[#allocation2 + $0xc] sm:$0xff]
    %v387 = vld [vmem:[#allocation2 + $0x1c] sm:$0xff]
    %v388 = vld [vmem:[#allocation2 + $0x24] sm:$0xff]
    %s389 = scalar_lea.vmem %s4, 4
    %v390 = vld [vmem:[%s389] sm:$0x1]
    %v392 = vlaneseq
    %v393 = vshrl.u32 %v392, 7
    %v394 = vsub.s32 0, %v393
    %v395 = vrot.slane %v390, %v394
    %v397 = vmul.f32 %v385, %v395
    %v398 = vmul.f32 %v386, %v395
    %v399 = vmul.f32 %v387, %v395
    %v400 = vmul.f32 %v388, %v395
    %v401 = vadd.f32 %v381, %v397
    %v402 = vadd.f32 %v382, %v398
    %v403 = vadd.f32 %v383, %v399
    %v404 = vadd.f32 %v384, %v400
    %405 = vst [vmem:[#allocation2 + $0x2] sm:$0xff] %v401
    %406 = vst [vmem:[#allocation2 + $0xa] sm:$0xff] %v402
    %407 = vst [vmem:[#allocation2 + $0x1a] sm:$0xff] %v403
    %408 = vst [vmem:[#allocation2 + $0x22] sm:$0xff] %v404
    %v409 = vld [vmem:[#allocation2] sm:$0xff]
    %v410 = vld [vmem:[#allocation2 + $0x8] sm:$0xff]
    %v411 = vld [vmem:[#allocation2 + $0x18] sm:$0xff]
    %v412 = vld [vmem:[#allocation2 + $0x20] sm:$0xff]
    %v413 = vld [vmem:[#allocation2 + $0x1] sm:$0xff]
    %v414 = vld [vmem:[#allocation2 + $0x9] sm:$0xff]
    %v415 = vld [vmem:[#allocation2 + $0x19] sm:$0xff]
    %v416 = vld [vmem:[#allocation2 + $0x21] sm:$0xff]
    %v417 = vld [vmem:[#allocation2 + $0x2] sm:$0xff]
    %v418 = vld [vmem:[#allocation2 + $0xa] sm:$0xff]
    %v419 = vld [vmem:[#allocation2 + $0x1a] sm:$0xff]
    %v420 = vld [vmem:[#allocation2 + $0x22] sm:$0xff]
    %v421 = vld [vmem:[#allocation2 + $0x3] sm:$0xff]
    %v422 = vld [vmem:[#allocation2 + $0xb] sm:$0xff]
    %v423 = vld [vmem:[#allocation2 + $0x1b] sm:$0xff]
    %v424 = vld [vmem:[#allocation2 + $0x23] sm:$0xff]
    %v425 = vld [vmem:[#allocation2 + $0x4] sm:$0xff]
    %v426 = vld [vmem:[#allocation2 + $0xc] sm:$0xff]
    %v427 = vld [vmem:[#allocation2 + $0x1c] sm:$0xff]
    %v428 = vld [vmem:[#allocation2 + $0x24] sm:$0xff]
    %v429 = vpack.c.bf16 %v410, %v409
    %v430 = vpack.c.bf16 %v414, %v413
    %v431 = vpack.c.bf16 %v418, %v417
    %v432 = vpack.c.bf16 %v422, %v421
    %v433 = vpack.c.bf16 %v426, %v425
    %v434 = vpack.c.bf16 %v412, %v411
    %v435 = vpack.c.bf16 %v416, %v415
    %v436 = vpack.c.bf16 %v420, %v419
    %v437 = vpack.c.bf16 %v424, %v423
    %v438 = vpack.c.bf16 %v428, %v427
    %v439 = vld [vmem:[#allocation6] sm:$0xf]
    %v440 = vld [vmem:[#allocation6 + $0x4] sm:$0xf]
    %v441 = vld [vmem:[#allocation6 + $0x8] sm:$0xf]
    %v442 = vld [vmem:[#allocation6 + $0xc] sm:$0xf]
    %v443 = vld [vmem:[#allocation6 + $0x10] sm:$0xf]
    %v444 = vld [vmem:[#allocation6 + $0x14] sm:$0xf]
    %v445 = vld [vmem:[#allocation6 + $0x18] sm:$0xf]
    %v446 = vld [vmem:[#allocation6 + $0x1c] sm:$0xf]
    %v447 = vld [vmem:[#allocation6 + $0x20] sm:$0xf]
    %v448 = vld [vmem:[#allocation6 + $0x24] sm:$0xf]
    %v449 = vld [vmem:[#allocation6 + $0x28] sm:$0xf]
    %v450 = vld [vmem:[#allocation6 + $0x2c] sm:$0xf]
    %v451 = vld [vmem:[#allocation6 + $0x30] sm:$0xf]
    %v452 = vld [vmem:[#allocation6 + $0x34] sm:$0xf]
    %v453 = vld [vmem:[#allocation6 + $0x38] sm:$0xf]
    %v454 = vld [vmem:[#allocation6 + $0x3c] sm:$0xf]
    %v455 = vld [vmem:[#allocation6 + $0x40] sm:$0xf]
    %v456 = vld [vmem:[#allocation6 + $0x44] sm:$0xf]
    %v457 = vld [vmem:[#allocation6 + $0x48] sm:$0xf]
    %v458 = vld [vmem:[#allocation6 + $0x4c] sm:$0xf]
    %v459 = vld [vmem:[#allocation6 + $0x50] sm:$0xf]
    %v460 = vld [vmem:[#allocation6 + $0x54] sm:$0xf]
    %v461 = vld [vmem:[#allocation6 + $0x58] sm:$0xf]
    %v462 = vld [vmem:[#allocation6 + $0x5c] sm:$0xf]
    %v463 = vld [vmem:[#allocation6 + $0x60] sm:$0xf]
    %v464 = vld [vmem:[#allocation6 + $0x64] sm:$0xf]
    %v465 = vld [vmem:[#allocation6 + $0x68] sm:$0xf]
    %v466 = vld [vmem:[#allocation6 + $0x6c] sm:$0xf]
    %v467 = vld [vmem:[#allocation6 + $0x70] sm:$0xf]
    %v468 = vld [vmem:[#allocation6 + $0x74] sm:$0xf]
    %v469 = vld [vmem:[#allocation6 + $0x78] sm:$0xf]
    %v470 = vld [vmem:[#allocation6 + $0x7c] sm:$0xf]
    %v471 = vld [vmem:[#allocation6 + $0x80] sm:$0xf]
    %v472 = vld [vmem:[#allocation6 + $0x84] sm:$0xf]
    %v473 = vld [vmem:[#allocation6 + $0x88] sm:$0xf]
    %v474 = vld [vmem:[#allocation6 + $0x8c] sm:$0xf]
    %v475 = vld [vmem:[#allocation6 + $0x90] sm:$0xf]
    %v476 = vld [vmem:[#allocation6 + $0x94] sm:$0xf]
    %v477 = vld [vmem:[#allocation6 + $0x98] sm:$0xf]
    %v478 = vld [vmem:[#allocation6 + $0x9c] sm:$0xf]
    %v479 = vld [vmem:[#allocation6 + $0xa0] sm:$0xf]
    %v480 = vld [vmem:[#allocation6 + $0xa4] sm:$0xf]
    %v481 = vld [vmem:[#allocation6 + $0xa8] sm:$0xf]
    %v482 = vld [vmem:[#allocation6 + $0xac] sm:$0xf]
    %v483 = vld [vmem:[#allocation6 + $0xb0] sm:$0xf]
    %v484 = vld [vmem:[#allocation6 + $0xb4] sm:$0xf]
    %v485 = vld [vmem:[#allocation6 + $0xb8] sm:$0xf]
    %v486 = vld [vmem:[#allocation6 + $0xbc] sm:$0xf]
    %v487 = vld [vmem:[#allocation6 + $0xc0] sm:$0xf]
    %v488 = vld [vmem:[#allocation6 + $0xc4] sm:$0xf]
    %v489 = vld [vmem:[#allocation6 + $0xc8] sm:$0xf]
    %v490 = vld [vmem:[#allocation6 + $0xcc] sm:$0xf]
    %v491 = vld [vmem:[#allocation6 + $0xd0] sm:$0xf]
    %v492 = vld [vmem:[#allocation6 + $0xd4] sm:$0xf]
    %v493 = vld [vmem:[#allocation6 + $0xd8] sm:$0xf]
    %v494 = vld [vmem:[#allocation6 + $0xdc] sm:$0xf]
    %v495 = vld [vmem:[#allocation6 + $0xe0] sm:$0xf]
    %v496 = vld [vmem:[#allocation6 + $0xe4] sm:$0xf]
    %v497 = vld [vmem:[#allocation6 + $0xe8] sm:$0xf]
    %v498 = vld [vmem:[#allocation6 + $0xec] sm:$0xf]
    %v499 = vld [vmem:[#allocation6 + $0xf0] sm:$0xf]
    %v500 = vld [vmem:[#allocation6 + $0xf4] sm:$0xf]
    %v501 = vld [vmem:[#allocation6 + $0xf8] sm:$0xf]
    %v502 = vld [vmem:[#allocation6 + $0xfc] sm:$0xf]
    %v503 = vld [vmem:[#allocation6 + $0x100] sm:$0xf]
    %v504 = vld [vmem:[#allocation6 + $0x104] sm:$0xf]
    %v505 = vld [vmem:[#allocation6 + $0x108] sm:$0xf]
    %v506 = vld [vmem:[#allocation6 + $0x10c] sm:$0xf]
    %v507 = vld [vmem:[#allocation6 + $0x110] sm:$0xf]
    %v508 = vld [vmem:[#allocation6 + $0x114] sm:$0xf]
    %v509 = vld [vmem:[#allocation6 + $0x118] sm:$0xf]
    %v510 = vld [vmem:[#allocation6 + $0x11c] sm:$0xf]
    %v511 = vld [vmem:[#allocation6 + $0x120] sm:$0xf]
    %v512 = vld [vmem:[#allocation6 + $0x124] sm:$0xf]
    %v513 = vld [vmem:[#allocation6 + $0x128] sm:$0xf]
    %v514 = vld [vmem:[#allocation6 + $0x12c] sm:$0xf]
    %v515 = vld [vmem:[#allocation6 + $0x130] sm:$0xf]
    %v516 = vld [vmem:[#allocation6 + $0x134] sm:$0xf]
    %v517 = vld [vmem:[#allocation6 + $0x138] sm:$0xf]
    %v518 = vld [vmem:[#allocation6 + $0x13c] sm:$0xf]
    %v599 = vunpack.c.l.b16 %v439
    %v600 = vunpack.c.l.b16 %v440
    %v601 = vunpack.c.l.b16 %v441
    %v602 = vunpack.c.l.b16 %v442
    %v603 = vunpack.c.l.b16 %v443
    %v604 = vunpack.c.l.b16 %v444
    %v605 = vunpack.c.l.b16 %v445
    %v606 = vunpack.c.l.b16 %v446
    %v607 = vunpack.c.l.b16 %v447
    %v608 = vunpack.c.l.b16 %v448
    %v609 = vunpack.c.l.b16 %v449
    %v610 = vunpack.c.l.b16 %v450
    %v611 = vunpack.c.l.b16 %v451
    %v612 = vunpack.c.l.b16 %v452
    %v613 = vunpack.c.l.b16 %v453
    %v614 = vunpack.c.l.b16 %v454
    %v615 = vunpack.c.l.b16 %v455
    %v616 = vunpack.c.l.b16 %v456
    %v617 = vunpack.c.l.b16 %v457
    %v618 = vunpack.c.l.b16 %v458
    %v619 = vunpack.c.l.b16 %v459
    %v620 = vunpack.c.l.b16 %v460
    %v621 = vunpack.c.l.b16 %v461
    %v622 = vunpack.c.l.b16 %v462
    %v623 = vunpack.c.l.b16 %v463
    %v624 = vunpack.c.l.b16 %v464
    %v625 = vunpack.c.l.b16 %v465
    %v626 = vunpack.c.l.b16 %v466
    %v627 = vunpack.c.l.b16 %v467
    %v628 = vunpack.c.l.b16 %v468
    %v629 = vunpack.c.l.b16 %v469
    %v630 = vunpack.c.l.b16 %v470
    %v631 = vunpack.c.l.b16 %v471
    %v632 = vunpack.c.l.b16 %v472
    %v633 = vunpack.c.l.b16 %v473
    %v634 = vunpack.c.l.b16 %v474
    %v635 = vunpack.c.l.b16 %v475
    %v636 = vunpack.c.l.b16 %v476
    %v637 = vunpack.c.l.b16 %v477
    %v638 = vunpack.c.l.b16 %v478
    %v639 = vunpack.c.l.b16 %v479
    %v640 = vunpack.c.l.b16 %v480
    %v641 = vunpack.c.l.b16 %v481
    %v642 = vunpack.c.l.b16 %v482
    %v643 = vunpack.c.l.b16 %v483
    %v644 = vunpack.c.l.b16 %v484
    %v645 = vunpack.c.l.b16 %v485
    %v646 = vunpack.c.l.b16 %v486
    %v647 = vunpack.c.l.b16 %v487
    %v648 = vunpack.c.l.b16 %v488
    %v649 = vunpack.c.l.b16 %v489
    %v650 = vunpack.c.l.b16 %v490
    %v651 = vunpack.c.l.b16 %v491
    %v652 = vunpack.c.l.b16 %v492
    %v653 = vunpack.c.l.b16 %v493
    %v654 = vunpack.c.l.b16 %v494
    %v655 = vunpack.c.l.b16 %v495
    %v656 = vunpack.c.l.b16 %v496
    %v657 = vunpack.c.l.b16 %v497
    %v658 = vunpack.c.l.b16 %v498
    %v659 = vunpack.c.l.b16 %v499
    %v660 = vunpack.c.l.b16 %v500
    %v661 = vunpack.c.l.b16 %v501
    %v662 = vunpack.c.l.b16 %v502
    %v663 = vunpack.c.l.b16 %v503
    %v664 = vunpack.c.l.b16 %v504
    %v665 = vunpack.c.l.b16 %v505
    %v666 = vunpack.c.l.b16 %v506
    %v667 = vunpack.c.l.b16 %v507
    %v668 = vunpack.c.l.b16 %v508
    %v669 = vunpack.c.l.b16 %v509
    %v670 = vunpack.c.l.b16 %v510
    %v671 = vunpack.c.l.b16 %v511
    %v672 = vunpack.c.l.b16 %v512
    %v673 = vunpack.c.l.b16 %v513
    %v674 = vunpack.c.l.b16 %v514
    %v675 = vunpack.c.l.b16 %v515
    %v676 = vunpack.c.l.b16 %v516
    %v677 = vunpack.c.l.b16 %v517
    %v678 = vunpack.c.l.b16 %v518
    %v679 = vpack.c.b16 %v600, %v599
    %v680 = vpack.c.b16 %v602, %v601
    %v681 = vpack.c.b16 %v604, %v603
    %v682 = vpack.c.b16 %v606, %v605
    %v683 = vpack.c.b16 %v608, %v607
    %v684 = vpack.c.b16 %v610, %v609
    %v685 = vpack.c.b16 %v612, %v611
    %v686 = vpack.c.b16 %v614, %v613
    %v687 = vpack.c.b16 %v616, %v615
    %v688 = vpack.c.b16 %v618, %v617
    %v689 = vpack.c.b16 %v620, %v619
    %v690 = vpack.c.b16 %v622, %v621
    %v691 = vpack.c.b16 %v624, %v623
    %v692 = vpack.c.b16 %v626, %v625
    %v693 = vpack.c.b16 %v628, %v627
    %v694 = vpack.c.b16 %v630, %v629
    %v695 = vpack.c.b16 %v632, %v631
    %v696 = vpack.c.b16 %v634, %v633
    %v697 = vpack.c.b16 %v636, %v635
    %v698 = vpack.c.b16 %v638, %v637
    %v699 = vpack.c.b16 %v640, %v639
    %v700 = vpack.c.b16 %v642, %v641
    %v701 = vpack.c.b16 %v644, %v643
    %v702 = vpack.c.b16 %v646, %v645
    %v703 = vpack.c.b16 %v648, %v647
    %v704 = vpack.c.b16 %v650, %v649
    %v705 = vpack.c.b16 %v652, %v651
    %v706 = vpack.c.b16 %v654, %v653
    %v707 = vpack.c.b16 %v656, %v655
    %v708 = vpack.c.b16 %v658, %v657
    %v709 = vpack.c.b16 %v660, %v659
    %v710 = vpack.c.b16 %v662, %v661
    %v711 = vpack.c.b16 %v664, %v663
    %v712 = vpack.c.b16 %v666, %v665
    %v713 = vpack.c.b16 %v668, %v667
    %v714 = vpack.c.b16 %v670, %v669
    %v715 = vpack.c.b16 %v672, %v671
    %v716 = vpack.c.b16 %v674, %v673
    %v717 = vpack.c.b16 %v676, %v675
    %v718 = vpack.c.b16 %v678, %v677
    %759 = vmatprep.subr.bf16.mxu0 0
    %760 = vmatpush1.bf16.msra.mxu0 %v679
    %761 = vmatprep.subr.bf16.mxu0 0
    %762 = vmatpush1.bf16.msra.mxu0 %v680
    %763 = vmatprep.subr.bf16.mxu0 0
    %764 = vmatpush1.bf16.msra.mxu0 %v681
    %765 = vmatprep.subr.bf16.mxu0 0
    %766 = vmatpush1.bf16.msra.mxu0 %v682
    %767 = vmatprep.subr.bf16.mxu0 0
    %768 = vmatpush1.bf16.msra.mxu0 %v683
    %769 = vmatprep.subr.bf16.mxu0 0
    %770 = vmatpush1.bf16.msra.mxu0 %v684
    %771 = vmatprep.subr.bf16.mxu0 0
    %772 = vmatpush1.bf16.msra.mxu0 %v685
    %773 = vmatprep.subr.bf16.mxu0 0
    %774 = vmatpush1.bf16.msra.mxu0 %v686
    %775 = vmatprep.subr.bf16.mxu0 0
    %776 = vmatpush1.bf16.msra.mxu0 %v687
    %777 = vmatprep.subr.bf16.mxu0 0
    %778 = vmatpush1.bf16.msra.mxu0 %v688
    %779 = vmatprep.subr.bf16.mxu0 0
    %780 = vmatpush1.bf16.msra.mxu0 %v689
    %781 = vmatprep.subr.bf16.mxu0 0
    %782 = vmatpush1.bf16.msra.mxu0 %v690
    %783 = vmatprep.subr.bf16.mxu0 0
    %784 = vmatpush1.bf16.msra.mxu0 %v691
    %785 = vmatprep.subr.bf16.mxu0 0
    %786 = vmatpush1.bf16.msra.mxu0 %v692
    %787 = vmatprep.subr.bf16.mxu0 0
    %788 = vmatpush1.bf16.msra.mxu0 %v693
    %789 = vmatprep.subr.bf16.mxu0 0
    %790 = vmatpush1.bf16.msra.mxu0 %v694
    %791 = vmatprep.mubr.bf16.mxu0 %v430
    %792 = vmatmul.mubr.bf16.gmra.mrb[0].mxu0 %v429
    %v793 = vpop.f32.mrb[0].mxu0
    %v794 = vadd.f32 0.0, %v793
    %v795 = vpop.f32.mrb[0].mxu0
    %v796 = vpop.f32.mrb[0].mxu0
    %v797 = vadd.f32 0.0, %v796
    %v798 = vpop.f32.mrb[0].mxu0
    %799 = vmatprep.mubr.bf16.mxu0 %v435
    %800 = vmatmul.mubr.bf16.gmra.mrb[0].mxu0 %v434
    %v801 = vpop.f32.mrb[0].mxu0
    %v802 = vadd.f32 0.0, %v801
    %v803 = vpop.f32.mrb[0].mxu0
    %v804 = vpop.f32.mrb[0].mxu0
    %v805 = vadd.f32 0.0, %v804
    %v806 = vpop.f32.mrb[0].mxu0
    %807 = vdwg.mxu0
    %808 = vmatprep.subr.bf16.mxu0 0
    %809 = vmatpush1.bf16.msra.mxu0 %v695
    %810 = vmatprep.subr.bf16.mxu0 0
    %811 = vmatpush1.bf16.msra.mxu0 %v696
    %812 = vmatprep.subr.bf16.mxu0 0
    %813 = vmatpush1.bf16.msra.mxu0 %v697
    %814 = vmatprep.subr.bf16.mxu0 0
    %815 = vmatpush1.bf16.msra.mxu0 %v698
    %816 = vmatprep.subr.bf16.mxu0 0
    %817 = vmatpush1.bf16.msra.mxu0 %v699
    %818 = vmatprep.subr.bf16.mxu0 0
    %819 = vmatpush1.bf16.msra.mxu0 %v700
    %820 = vmatprep.subr.bf16.mxu0 0
    %821 = vmatpush1.bf16.msra.mxu0 %v701
    %822 = vmatprep.subr.bf16.mxu0 0
    %823 = vmatpush1.bf16.msra.mxu0 %v702
    %824 = vmatprep.subr.bf16.mxu0 0
    %825 = vmatpush1.bf16.msra.mxu0 %v703
    %826 = vmatprep.subr.bf16.mxu0 0
    %827 = vmatpush1.bf16.msra.mxu0 %v704
    %828 = vmatprep.subr.bf16.mxu0 0
    %829 = vmatpush1.bf16.msra.mxu0 %v705
    %830 = vmatprep.subr.bf16.mxu0 0
    %831 = vmatpush1.bf16.msra.mxu0 %v706
    %832 = vmatprep.subr.bf16.mxu0 0
    %833 = vmatpush1.bf16.msra.mxu0 %v707
    %834 = vmatprep.subr.bf16.mxu0 0
    %835 = vmatpush1.bf16.msra.mxu0 %v708
    %836 = vmatprep.subr.bf16.mxu0 0
    %837 = vmatpush1.bf16.msra.mxu0 %v709
    %838 = vmatprep.subr.bf16.mxu0 0
    %839 = vmatpush1.bf16.msra.mxu0 %v710
    %840 = vmatprep.mubr.bf16.mxu0 %v432
    %841 = vmatmul.mubr.bf16.gmra.mrb[0].mxu0 %v431
    %v842 = vpop.f32.mrb[0].mxu0
    %v843 = vadd.f32 %v794, %v842
    %v844 = vpop.f32.mrb[0].mxu0
    %v845 = vpop.f32.mrb[0].mxu0
    %v846 = vadd.f32 %v797, %v845
    %v847 = vpop.f32.mrb[0].mxu0
    %848 = vmatprep.mubr.bf16.mxu0 %v437
    %849 = vmatmul.mubr.bf16.gmra.mrb[0].mxu0 %v436
    %v850 = vpop.f32.mrb[0].mxu0
    %v851 = vadd.f32 %v802, %v850
    %v852 = vpop.f32.mrb[0].mxu0
    %v853 = vpop.f32.mrb[0].mxu0
    %v854 = vadd.f32 %v805, %v853
    %v855 = vpop.f32.mrb[0].mxu0
    %856 = vdwg.mxu0
    %857 = vmatprep.subr.bf16.mxu0 0
    %858 = vmatpush1.bf16.msra.mxu0 %v711
    %859 = vmatprep.subr.bf16.mxu0 0
    %860 = vmatpush1.bf16.msra.mxu0 %v712
    %861 = vmatprep.subr.bf16.mxu0 0
    %862 = vmatpush1.bf16.msra.mxu0 %v713
    %863 = vmatprep.subr.bf16.mxu0 0
    %864 = vmatpush1.bf16.msra.mxu0 %v714
    %865 = vmatprep.subr.bf16.mxu0 0
    %866 = vmatpush1.bf16.msra.mxu0 %v715
    %867 = vmatprep.subr.bf16.mxu0 0
    %868 = vmatpush1.bf16.msra.mxu0 %v716
    %869 = vmatprep.subr.bf16.mxu0 0
    %870 = vmatpush1.bf16.msra.mxu0 %v717
    %871 = vmatprep.subr.bf16.mxu0 0
    %872 = vmatpush1.bf16.msra.mxu0 %v718
    %873 = vmatprep.subr.bf16.mxu0 0
    %874 = vmatpush1.bf16.msra.mxu0 0
    %875 = vmatprep.subr.bf16.mxu0 0
    %876 = vmatpush1.bf16.msra.mxu0 0
    %877 = vmatprep.subr.bf16.mxu0 0
    %878 = vmatpush1.bf16.msra.mxu0 0
    %879 = vmatprep.subr.bf16.mxu0 0
    %880 = vmatpush1.bf16.msra.mxu0 0
    %881 = vmatprep.subr.bf16.mxu0 0
    %882 = vmatpush1.bf16.msra.mxu0 0
    %883 = vmatprep.subr.bf16.mxu0 0
    %884 = vmatpush1.bf16.msra.mxu0 0
    %885 = vmatprep.subr.bf16.mxu0 0
    %886 = vmatpush1.bf16.msra.mxu0 0
    %887 = vmatprep.subr.bf16.mxu0 0
    %888 = vmatpush1.bf16.msra.mxu0 0
    %889 = vmatprep.mubr.bf16.mxu0 0
    %890 = vmatmul.mubr.bf16.gmra.mrb[0].mxu0 %v433
    %v891 = vpop.f32.mrb[0].mxu0
    %v892 = vadd.f32 %v843, %v891
    %v893 = vpop.f32.mrb[0].mxu0
    %v894 = vpop.f32.mrb[0].mxu0
    %v895 = vadd.f32 %v846, %v894
    %v896 = vpop.f32.mrb[0].mxu0
    %897 = vmatprep.mubr.bf16.mxu0 0
    %898 = vmatmul.mubr.bf16.gmra.mrb[0].mxu0 %v438
    %v899 = vpop.f32.mrb[0].mxu0
    %v900 = vadd.f32 %v851, %v899
    %v901 = vpop.f32.mrb[0].mxu0
    %v902 = vpop.f32.mrb[0].mxu0
    %v903 = vadd.f32 %v854, %v902
    %v904 = vpop.f32.mrb[0].mxu0
    %905 = vdwg.mxu0
    %v906 = vadd.f32 %v53, %v401
    %v907 = vadd.f32 %v54, %v402
    %v908 = vadd.f32 %v55, %v403
    %v909 = vadd.f32 %v56, %v404
    %v910 = vadd.f32 %v906, %v892
    %v911 = vadd.f32 %v907, %v895
    %v912 = vadd.f32 %v908, %v900
    %v913 = vadd.f32 %v909, %v903
    %914 = vst [vmem:[#allocation8] sm:$0xff] %v910
    %915 = vst [vmem:[#allocation8 + $0x8] sm:$0xff] %v911
    %916 = vst [vmem:[#allocation8 + $0x10] sm:$0xff] %v912
    %917 = vst [vmem:[#allocation8 + $0x18] sm:$0xff] %v913
    // Predicated region
    $region34: #{uni_deep_fsmn_dual.1} parent=1 // pred_check
      _
    $region35: #{uni_deep_fsmn_dual.1} parent=1 // pred_check_branch
      %919 = sbr.rel (0) target = $region37
    $region36: #{uni_deep_fsmn_dual.1} parent=1 // pred_region
      %s921 = ssub.s32 512, 512
      %922 = vsyncadd [#allocation5], %s921
      %s923 = sshll.u32 [#allocation8], 4
      %s924 = int_to_ptr.vmem [resolvable:$true] %s923
      %929 = dma.vmem_to_hbm [thread:$0]  %s924, 512, %s6, [#allocation5], 128, 128, 8
    $region37: #{uni_deep_fsmn_dual.1} parent=1 // pred_fallthru
      _
    // Predicated region
    $region38: #{uni_deep_fsmn_dual.1} parent=1 // pred_check
      _
    $region39: #{uni_deep_fsmn_dual.1} parent=1 // pred_check_branch
      %931 = sbr.rel (0) target = $region41
    $region40: #{uni_deep_fsmn_dual.1} parent=1 // pred_region
      %932 = dma.done [#allocation5], 512
    $region41: #{uni_deep_fsmn_dual.1} parent=1 // pred_fallthru
      _
    %933 = vsyncpa [#allocation4], 1
    %934 = vsyncpa [#allocation7], 1
    %935 = vsyncpa [#allocation5], 1

</llo_original>
